<compile_context>
chip_gen: v7x
topology: tpu7x:2x2x1
jax: 0.10.0
libtpu: 0.0.40
codegen_flags: <defaults>
</compile_context>

<pallas_src>
import math

import jax
import jax.numpy as jnp
from jax.experimental import pallas as pl
from jax.experimental.pallas import tpu as pltpu


def _laplacian_kernel(nia_ref, x_ref, o_ref):
    # nia_ref : (TB, 1)   per-row -1/a (precomputed in the wrapper)
    # x_ref   : (TB, TN)  lane-dense slab of the flattened input
    # o_ref   : (TB, TN)
    o_ref[...] = jnp.exp(jnp.abs(x_ref[...]) * nia_ref[...]).astype(o_ref.dtype)


def _round_up(v, m):
    return ((v + m - 1) // m) * m


def _sublane_unit(dtype):
    size = jnp.dtype(dtype).itemsize
    if size >= 4:
        return 8
    if size == 2:
        return 16
    return 32


def _choose_row_split(batch, n_pad, su):
    """Pick k (a divisor of n_pad // 128) so batch*k >= su when possible.

    Keeps the column count (n_pad // k) a multiple of 128 while raising the
    row count for sublane density when the batch is small.
    """
    if batch >= su or n_pad < 256:
        return 1
    m = n_pad // 128
    best = 1
    for k in range(1, m + 1):
        if m % k == 0:
            best = k
            if batch * k >= su:
                break
    return best


def laplacian_forward(x, codes, weight, agnostic_a, factor):
    """x: (B, ...) float, codes: (B, code), weight: (1, code), agnostic_a: (1,)."""
    orig_shape = x.shape
    B = orig_shape[0]
    N = 1
    for d in orig_shape[1:]:
        N *= d

    # ---- hoisted scalar path: a = agnostic_a + factor * codes @ W^T  (negligible FLOPs)
    lin = codes.astype(jnp.float32) @ weight.astype(jnp.float32).T        # (B, 1)
    a = agnostic_a.astype(jnp.float32).reshape(1, 1) + factor * lin       # (B, 1)
    neg_inv_a = -1.0 / a                                                  # (B, 1) f32
    if x.dtype in (jnp.bfloat16, jnp.float16):
        # keep abs/mul/exp on the bf16 VPU/EUP path (v6e/v7x)
        neg_inv_a = neg_inv_a.astype(x.dtype)

    # ---- lane-dense 2D view: pad cols to a multiple of 128, split rows for sublane density
    x2 = x.reshape(B, N)
    n_pad = _round_up(N, 128)
    if n_pad != N:
        x2 = jnp.pad(x2, ((0, 0), (0, n_pad - N)))                        # zeros -> exp(0)=1, sliced off
    su = _sublane_unit(x.dtype)
    k = _choose_row_split(B, n_pad, su)
    R, C = B * k, n_pad // k
    x2 = x2.reshape(R, C)
    nia = jnp.repeat(neg_inv_a, k, axis=0) if k > 1 else neg_inv_a        # (R, 1)

    # ---- tiling: ~2 MiB per x tile, cdiv grid (ragged last blocks are masked by Pallas)
    itemsize = jnp.dtype(x.dtype).itemsize
    budget_elems = (2 * 1024 * 1024) // itemsize
    tn = min(C, 32768)                          # C is always a multiple of 128
    row_cap = max(su, budget_elems // tn)
    tb = R if R <= row_cap else (row_cap // su) * su

    # v7x: guarantee >= 2 blocks so both TensorCores get work (no-op cost on v5e/v6e)
    if pl.cdiv(R, tb) * pl.cdiv(C, tn) < 2:
        if C >= 256:
            tn = max(128, ((C // 2) // 128) * 128)
        elif R >= 2 * su:
            tb = max(su, ((R // 2) // su) * su)

    grid = (pl.cdiv(R, tb), pl.cdiv(C, tn))

    out = pl.pallas_call(
        _laplacian_kernel,
        out_shape=jax.ShapeDtypeStruct((R, C), x.dtype),
        grid=grid,
        in_specs=[
            pl.BlockSpec((tb, 1), lambda i, j: (i, 0)),    # -1/a per row (re-DMA only when i changes)
            pl.BlockSpec((tb, tn), lambda i, j: (i, j)),   # x slab
        ],
        out_specs=pl.BlockSpec((tb, tn), lambda i, j: (i, j)),
        compiler_params=pltpu.CompilerParams(
            dimension_semantics=("parallel", "parallel"),
            vmem_limit_bytes=32 * 1024 * 1024,
        ),
        cost_estimate=pl.CostEstimate(
            flops=2 * R * C,
            transcendentals=R * C,
            bytes_accessed=2 * R * C * itemsize + R * itemsize,
        ),
    )(nia, x2)

    out = out.reshape(B, n_pad)
    if n_pad != N:
        out = out[:, :N]
    return out.reshape(orig_shape)


def laplacian_reference(x, codes, weight, agnostic_a, factor):
    # Pure-JAX reference mirroring the PyTorch forward.
    lin = codes @ weight.T                       # (B, 1)
    a = agnostic_a + factor * lin                # (B, 1)
    if x.ndim == 3:
        a = a[..., None]
    if x.ndim == 4:
        a = a[..., None, None]
    return jnp.exp(-jnp.abs(x) / a)


if __name__ == "__main__":
    code = 32
    factor = 0.1

    key = jax.random.PRNGKey(0)
    kx, kc, kw, kx3 = jax.random.split(key, 4)

    # Deterministic parameter init (uniform in [-1/sqrt(code), 1/sqrt(code)]).
    bound = 1.0 / math.sqrt(code)
    weight = jax.random.uniform(kw, (1, code), dtype=jnp.float32,
                                minval=-bound, maxval=bound)
    agnostic_a = jnp.array([1.0], dtype=jnp.float32)

    # Case 1: 4-D input (B, C, H, W) — the module's main use case.
    B, C, H, W = 2, 4, 16, 16
    x = jax.random.normal(kx, (B, C, H, W), dtype=jnp.float32)
    codes = jax.random.normal(kc, (B, code), dtype=jnp.float32)

    out = laplacian_forward(x, codes, weight, agnostic_a, factor)
    out = jax.block_until_ready(out)
    ref = laplacian_reference(x, codes, weight, agnostic_a, factor)
    assert out.shape == ref.shape and out.dtype == ref.dtype
    assert jnp.allclose(out, ref, atol=1e-5, rtol=1e-5), "mismatch vs reference (4D)"

    # Case 2: 3-D input with a non-128-aligned flattened size (exercises padding + ragged path).
    x3 = jax.random.normal(kx3, (B, 3, 50), dtype=jnp.float32)
    out3 = laplacian_forward(x3, codes, weight, agnostic_a, factor)
    out3 = jax.block_until_ready(out3)
    ref3 = laplacian_reference(x3, codes, weight, agnostic_a, factor)
    assert out3.shape == ref3.shape and out3.dtype == ref3.dtype
    assert jnp.allclose(out3, ref3, atol=1e-5, rtol=1e-5), "mismatch vs reference (3D)"

    print("KERNEL_OK")
</pallas_src>

<mosaic_0001>
module attributes {stable_mosaic.version = 11 : i64} {
  func.func @_laplacian_kernel(%arg0: i32, %arg1: i32, %arg2: memref<8x1xf32, #tpu.memory_space<vmem>>, %arg3: memref<8x128xf32, #tpu.memory_space<vmem>>, %arg4: memref<8x128xf32, #tpu.memory_space<vmem>>) attributes {dimension_semantics = [#tpu.dimension_semantics<parallel>, #tpu.dimension_semantics<parallel>], iteration_bounds = array<i64: 1, 2>, scalar_prefetch = 0 : i64, scratch_operands = 0 : i64, tpu.core_type = #tpu.core_type<tc>, window_params = [{transform_indices = @transform_0, window_bounds = array<i64: 8, 1>}, {transform_indices = @transform_1, window_bounds = array<i64: 8, 128>}, {transform_indices = @transform_2, window_bounds = array<i64: 8, 128>}]} {
    %c0 = arith.constant 0 : index
    %c0_0 = arith.constant 0 : index
    %0 = vector.load %arg3[%c0, %c0_0] : memref<8x128xf32, #tpu.memory_space<vmem>>, vector<8x128xf32>
    %1 = math.absf %0 : vector<8x128xf32>
    %c0_1 = arith.constant 0 : index
    %c0_2 = arith.constant 0 : index
    %2 = vector.load %arg2[%c0_1, %c0_2] : memref<8x1xf32, #tpu.memory_space<vmem>>, vector<8x1xf32>
    %3 = vector.broadcast %2 : vector<8x1xf32> to vector<8x128xf32>
    %4 = arith.mulf %1, %3 : vector<8x128xf32>
    %5 = math.exp %4 : vector<8x128xf32>
    %c0_3 = arith.constant 0 : index
    %c0_4 = arith.constant 0 : index
    %6 = vector.load %arg4[%c0_3, %c0_4] : memref<8x128xf32, #tpu.memory_space<vmem>>, vector<8x128xf32>
    tpu.vector_store %arg4[%c0_3, %c0_4], %5 {strides = array<i32>} : memref<8x128xf32, #tpu.memory_space<vmem>>, vector<8x128xf32>,
    return
  }
  func.func @transform_0(%arg0: i32, %arg1: i32) -> (i32, i32) {
    %c0_i32 = arith.constant 0 : i32
    %c0_i32_0 = arith.constant 0 : i32
    return %arg0, %c0_i32 : i32, i32
  }
  func.func @transform_1(%arg0: i32, %arg1: i32) -> (i32, i32) {
    %c0_i32 = arith.constant 0 : i32
    return %arg0, %arg1 : i32, i32
  }
  func.func @transform_2(%arg0: i32, %arg1: i32) -> (i32, i32) {
    %c0_i32 = arith.constant 0 : i32
    return %arg0, %arg1 : i32, i32
  }
}

</mosaic_0001>

<llo_original>
// kernel: tpu_custom_call.1
$region0: #{tpu_custom_call.1}
  #allocation0 [shape = 'u32[]', space=smem, size = 0x4, offset = 0x4, fixed_abs, tag = 'smem constant byte address 0x4 - core index']
  #allocation1 [shape = 'u32[144,128]{1,0:T(1,128)}', space=vmem, size = 0x12000, scoped, tag = 'internal scratch']
  %s0 = inlined_call_operand.vmem [shape: f32[8,1], index: 0, kind: input, shape index: {}]
  %s1 = inlined_call_operand.hbm [shape: f32[8,256], index: 1, kind: input, shape index: {}]
  %s2 = inlined_call_operand.hbm [shape: f32[8,256], index: 2, kind: output, shape index: {}]
  %s3 = sld [smem:[#allocation0]]
  $region45: #{tpu_custom_call.1} parent=0
    _
  %s5 = ssub.s32 1, %s3
  %s6 = scalar_select 0, %s5, %s3
  $region1: #{tpu_custom_call.1} parent=0
    #allocation2 [shape = 'u8[8192]{0}', space=vmem, size = 0x2000, scoped, tag = 'input window, operand 1']
    #allocation3 [shape = 's32[2]{0}', space=sflag, size = 0x8, scoped, tag = 'scoped memory for tpu_custom_call.1']
    #allocation4 [shape = 's32[2]{0}', space=sflag, size = 0x8, scoped, tag = 'scoped memory for tpu_custom_call.1']
    #allocation5 [shape = 'u8[8192]{0}', space=vmem, size = 0x2000, scoped, tag = 'output window, operand 0']
    %7 = vsyncpa [#allocation3], 0
    %s8 = scalar_lea.sflag [#allocation3], 1
    %9 = vsyncpa %s8, 0
    %10 = vsyncpa [#allocation4], 0
    %s11 = scalar_lea.sflag [#allocation4], 1
    %12 = vsyncpa %s11, 0
    loop: start=0, step=1, limit=4
    $region2: #{tpu_custom_call.1} parent=1 // loop_pre_header
      _
    $region3: #{tpu_custom_call.1} parent=1 // loop_header
      %s14 = sphi 0, %s18
      %p15 = scmp.ge.s32.totalorder %s14, 4
      %s21 = sphi 0, %s33
      %s22 = sphi 0, %s29
      %s23 = sphi 0, %s21
      %s24 = sphi 0, %s22
      %s25 = sphi 0, %s23
      %s26 = sphi 0, %s24
      %s36 = sphi 0, %s38
      %s39 = sphi 0, %s36
      %s40 = sphi 0, %s39
      %s56 = sphi 0, %s40
      %s64 = sphi 0, %s66
      %s67 = sphi 0, %s64
      %s68 = sphi 0, %s67
      %s84 = sphi 0, %s68
      %s92 = sphi 0, %s94
      %s95 = sphi 0, %s92
      %s96 = sphi 0, %s95
      %s112 = sphi 0, %s96
    $region4: #{tpu_custom_call.1} parent=1 // loop_header_branch
      %17 = sbr.rel (%p15) target = $region8
    $region5: #{tpu_custom_call.1} parent=1 // loop_body
      %s19 = ssub.s32 %s14, 1
      %s20 = ssub.s32 %s14, 2
      %s27 = sadd.s32 1, %s22
      %p28 = scmp.ge.s32.totalorder %s27, 2
      %s29 = scalar_select %p28, 0, %s27
      %s30 = sadd.s32 1, %s21
      %s31 = scalar_select %p28, %s30, %s21
      %p32 = scmp.ge.s32.totalorder %s31, 1
      %s33 = scalar_select %p32, 0, %s31
      %s34 = ssub.s32 %s21, %s33
      %p35 = scmp.eq.s32.totalorder %s34, 0
      %s37 = sadd.s32 %s36, 1
      %s38 = scalar_select %p35, %s36, %s37
      %p41 = pneg %p35
      %p42 = scmp.eq.s32.totalorder %s14, 1
      %p43 = por %p41, %p42
      %p44 = scmp.ne.s32.totalorder %s36, %s39
      %p45 = scmp.eq.s32.totalorder %s14, 0
      %p46 = por %p44, %p45
      %p47 = scmp.ne.s32.totalorder %s36, %s39
      %p48 = scmp.eq.s32.totalorder %s19, 1
      %p49 = por %p47, %p48
      %p50 = scmp.ne.s32.totalorder %s39, %s40
      %p51 = scmp.eq.s32.totalorder %s19, 0
      %p52 = por %p50, %p51
      %p53 = scmp.ne.s32.totalorder %s39, %s40
      %p54 = scmp.eq.s32.totalorder %s20, 1
      %p55 = por %p53, %p54
      %p57 = scmp.ne.s32.totalorder %s40, %s56
      %p58 = scmp.eq.s32.totalorder %s20, 0
      %p59 = por %p57, %p58
      %s60 = ssub.s32 %s21, %s33
      %s61 = ssub.s32 %s22, %s29
      %s62 = sor.u32 %s60, %s61
      %p63 = scmp.eq.s32.totalorder %s62, 0
      %s65 = sadd.s32 %s64, 1
      %s66 = scalar_select %p63, %s64, %s65
      %p69 = pneg %p63
      %p70 = scmp.eq.s32.totalorder %s14, 1
      %p71 = por %p69, %p70
      %p72 = scmp.ne.s32.totalorder %s64, %s67
      %p73 = scmp.eq.s32.totalorder %s14, 0
      %p74 = por %p72, %p73
      %p75 = scmp.ne.s32.totalorder %s64, %s67
      %p76 = scmp.eq.s32.totalorder %s19, 1
      %p77 = por %p75, %p76
      %p78 = scmp.ne.s32.totalorder %s67, %s68
      %p79 = scmp.eq.s32.totalorder %s19, 0
      %p80 = por %p78, %p79
      %p81 = scmp.ne.s32.totalorder %s67, %s68
      %p82 = scmp.eq.s32.totalorder %s20, 1
      %p83 = por %p81, %p82
      %p85 = scmp.ne.s32.totalorder %s68, %s84
      %p86 = scmp.eq.s32.totalorder %s20, 0
      %p87 = por %p85, %p86
      %s88 = ssub.s32 %s21, %s33
      %s89 = ssub.s32 %s22, %s29
      %s90 = sor.u32 %s88, %s89
      %p91 = scmp.eq.s32.totalorder %s90, 0
      %s93 = sadd.s32 %s92, 1
      %s94 = scalar_select %p91, %s92, %s93
      %p97 = pneg %p91
      %p98 = scmp.eq.s32.totalorder %s14, 1
      %p99 = por %p97, %p98
      %p100 = scmp.ne.s32.totalorder %s92, %s95
      %p101 = scmp.eq.s32.totalorder %s14, 0
      %p102 = por %p100, %p101
      %p103 = scmp.ne.s32.totalorder %s92, %s95
      %p104 = scmp.eq.s32.totalorder %s19, 1
      %p105 = por %p103, %p104
      %p106 = scmp.ne.s32.totalorder %s95, %s96
      %p107 = scmp.eq.s32.totalorder %s19, 0
      %p108 = por %p106, %p107
      %p109 = scmp.ne.s32.totalorder %s95, %s96
      %p110 = scmp.eq.s32.totalorder %s20, 1
      %p111 = por %p109, %p110
      %p113 = scmp.ne.s32.totalorder %s96, %s112
      %p114 = scmp.eq.s32.totalorder %s20, 0
      %p115 = por %p113, %p114
      %p116 = scmp.le.s32.totalorder 1, %s14
      %p117 = scmp.lt.s32.totalorder %s14, 3
      %p118 = pnand %p116, %p117
      %p119 = pneg %p118
      // Predicated region
      $region9: #{tpu_custom_call.1} parent=5 // pred_check
        _
      $region10: #{tpu_custom_call.1} parent=5 // pred_check_branch
        %121 = sbr.rel (%p118) target = $region12
      $region11: #{tpu_custom_call.1} parent=5 // pred_region
        %s122 = ssub.s32 %s14, 1
        // Predicated region
        $region13: #{tpu_custom_call.1} parent=11 // pred_check
          %p123 = pneg %p52
        $region14: #{tpu_custom_call.1} parent=11 // pred_check_branch
          %125 = sbr.rel (%p123) target = $region16
        $region15: #{tpu_custom_call.1} parent=11 // pred_region
          %p126 = scmp.lt.s32.totalorder %s23, 0
          %s127 = scalar_select %p126, %s23, 0
          %s128 = smul.addr %s127, 8
          %s129 = scalar_lea.vmem %s0, %s128
        $region16: #{tpu_custom_call.1} parent=11 // pred_fallthru
          _
      $region12: #{tpu_custom_call.1} parent=5 // pred_fallthru
        _
      %p130 = scmp.lt.s32.totalorder %s14, 2
      // Predicated region
      $region17: #{tpu_custom_call.1} parent=5 // pred_check
        %p131 = pneg %p130
      $region18: #{tpu_custom_call.1} parent=5 // pred_check_branch
        %133 = sbr.rel (%p131) target = $region20
      $region19: #{tpu_custom_call.1} parent=5 // pred_region
        // Predicated region
        $region21: #{tpu_custom_call.1} parent=19 // pred_check
          %p134 = pneg %p74
        $region22: #{tpu_custom_call.1} parent=19 // pred_check_branch
          %136 = sbr.rel (%p134) target = $region24
        $region23: #{tpu_custom_call.1} parent=19 // pred_region
          %s137 = sand.u32 %s64, 1
          %s138 = scalar_lea.sflag [#allocation3], %s137
          %s139 = sand.u32 %s64, 1
          %s140 = smul.addr %s139, 8
          %s141 = scalar_lea.vmem [#allocation2], %s140
          %s143 = ssub.s32 128, 128
          %144 = vsyncadd %s138, %s143
          %s145 = smul.addr %s21, 2
          %s146 = sadd.s32 %s22, %s145
          %s147 = smul.addr %s146, 128
          %s148 = scalar_lea.hbm %s1, %s147
          %s150 = sshll.u32 %s141, 4
          %s151 = int_to_ptr.vmem [resolvable:$true] %s150
          %153 = dma.hbm_to_vmem [thread:$0]  %s148, 128, %s151, %s138
        $region24: #{tpu_custom_call.1} parent=19 // pred_fallthru
          _
      $region20: #{tpu_custom_call.1} parent=5 // pred_fallthru
        _
      %p154 = scmp.le.s32.totalorder 1, %s14
      %p155 = scmp.lt.s32.totalorder %s14, 3
      %p156 = pnand %p154, %p155
      %p157 = pneg %p156
      // Predicated region
      $region25: #{tpu_custom_call.1} parent=5 // pred_check
        _
      $region26: #{tpu_custom_call.1} parent=5 // pred_check_branch
        %159 = sbr.rel (%p156) target = $region28
      $region27: #{tpu_custom_call.1} parent=5 // pred_region
        %s160 = ssub.s32 %s14, 1
        %s161 = sand.u32 %s67, 1
        %s162 = scalar_lea.sflag [#allocation3], %s161
        %s163 = sand.u32 %s67, 1
        %s164 = smul.addr %s163, 8
        %s165 = scalar_lea.vmem [#allocation2], %s164
        // Predicated region
        $region29: #{tpu_custom_call.1} parent=27 // pred_check
          %p166 = pneg %p80
        $region30: #{tpu_custom_call.1} parent=27 // pred_check_branch
          %168 = sbr.rel (%p166) target = $region32
        $region31: #{tpu_custom_call.1} parent=27 // pred_region
          %169 = dma.done %s162, 128
        $region32: #{tpu_custom_call.1} parent=27 // pred_fallthru
          _
        %p170 = scmp.lt.s32.totalorder %s23, 0
        %s171 = scalar_select %p170, %s23, 0
        %s172 = smul.addr %s171, 8
        %s173 = scalar_lea.vmem %s0, %s172
        %p174 = pneg %p52
        %p175 = pneg %p49
        %s176 = sand.u32 %s67, 1
        %s177 = scalar_lea.sflag [#allocation3], %s176
        %s178 = sand.u32 %s67, 1
        %s179 = smul.addr %s178, 8
        %s180 = scalar_lea.vmem [#allocation2], %s179
        %p181 = pneg %p80
        %p182 = pneg %p77
        %p183 = pneg %p108
        %p184 = pneg %p105
        %s185 = sand.u32 %s95, 1
        %s186 = scalar_lea.sflag [#allocation4], %s185
        %s187 = sand.u32 %s95, 1
        %s188 = smul.addr %s187, 8
        %s189 = scalar_lea.vmem [#allocation5], %s188
        %p190 = scmp.lt.s32.totalorder %s23, 0
        %s191 = scalar_select %p190, %s23, 0
        %s192 = smul.addr %s191, 8
        %s193 = scalar_lea.vmem %s0, %s192
        %v194 = vld [vmem:[%s165] sm:$0xff]
        %v195 = vand.u32 2147483647, %v194
        %v196 = vld [vmem:[%s193] sm:$0xff]
        %198 = vset.pattern.permute.xlu0 0
        %199 = vperm.xlu0 %198, %v196
        %v200 = vpop.permute.xlu0 %199
        %v202 = vmul.f32 %v195, %v200
        %v203 = vmul.f32 %v202, 1.442695
        %v204 = vpow.pop %v203
        %205 = vst [vmem:[%s189] sm:$0xff] %v204
        %s206 = sand.u32 %s95, 1
        %s207 = scalar_lea.sflag [#allocation4], %s206
        %s208 = sand.u32 %s95, 1
        %s209 = smul.addr %s208, 8
        %s210 = scalar_lea.vmem [#allocation5], %s209
        // Predicated region
        $region33: #{tpu_custom_call.1} parent=27 // pred_check
          %p211 = pneg %p105
        $region34: #{tpu_custom_call.1} parent=27 // pred_check_branch
          %213 = sbr.rel (%p211) target = $region36
        $region35: #{tpu_custom_call.1} parent=27 // pred_region
          %s215 = ssub.s32 128, 128
          %216 = vsyncadd %s207, %s215
          %s217 = smul.addr %s23, 2
          %s218 = sadd.s32 %s24, %s217
          %s219 = smul.addr %s218, 128
          %s220 = scalar_lea.hbm %s2, %s219
          %s222 = sshll.u32 %s210, 4
          %s223 = int_to_ptr.vmem [resolvable:$true] %s222
          %225 = dma.vmem_to_hbm [thread:$0]  %s223, 128, %s220, %s207
        $region36: #{tpu_custom_call.1} parent=27 // pred_fallthru
          _
      $region28: #{tpu_custom_call.1} parent=5 // pred_fallthru
        _
      %p226 = scmp.le.s32.totalorder 2, %s14
      // Predicated region
      $region37: #{tpu_custom_call.1} parent=5 // pred_check
        %p227 = pneg %p226
      $region38: #{tpu_custom_call.1} parent=5 // pred_check_branch
        %229 = sbr.rel (%p227) target = $region40
      $region39: #{tpu_custom_call.1} parent=5 // pred_region
        %s230 = ssub.s32 %s14, 2
        // Predicated region
        $region41: #{tpu_custom_call.1} parent=39 // pred_check
          %p231 = pneg %p111
        $region42: #{tpu_custom_call.1} parent=39 // pred_check_branch
          %233 = sbr.rel (%p231) target = $region44
        $region43: #{tpu_custom_call.1} parent=39 // pred_region
          %s234 = sand.u32 %s96, 1
          %s235 = scalar_lea.sflag [#allocation4], %s234
          %s236 = sand.u32 %s96, 1
          %s237 = smul.addr %s236, 8
          %s238 = scalar_lea.vmem [#allocation5], %s237
          %239 = dma.done %s235, 128
        $region44: #{tpu_custom_call.1} parent=39 // pred_fallthru
          _
      $region40: #{tpu_custom_call.1} parent=5 // pred_fallthru
        _
    $region6: #{tpu_custom_call.1} parent=1 // loop_footer
      %s18 = sadd.s32 1, %s14
    $region7: #{tpu_custom_call.1} parent=1 // loop_footer_branch
      %13 = sbr.rel target = $region3
    $region8: #{tpu_custom_call.1} parent=1 // loop_exit
      _
    %240 = vsyncpa [#allocation3], 1
    %s241 = scalar_lea.sflag [#allocation3], 1
    %242 = vsyncpa %s241, 1
    %243 = vsyncpa [#allocation4], 1
    %s244 = scalar_lea.sflag [#allocation4], 1
    %245 = vsyncpa %s244, 1

</llo_original>
